<compile_context>
chip_gen: v7x
topology: tpu7x:2x2x1
jax: 0.10.0
libtpu: 0.0.40
codegen_flags: <defaults>
</compile_context>

<pallas_src>
import math

import jax
import jax.numpy as jnp
from jax.experimental import pallas as pl
from jax.experimental.pallas import tpu as pltpu

_VMEM_LIMIT_BYTES = 32 << 20   # <= physical/scoped VMEM on v5e / v6e / v7x
_TILE_BUDGET_BYTES = 12 << 20  # double-buffered x/out tiles + f32 acc headroom


def _pick_th(h, nw, c_in, c_out, align, budget=_TILE_BUDGET_BYTES):
    """Pick an H-tile `th` (multiple of `align`) and a padded H so th | Hp.

    Keeps the double-buffered x/out tiles plus an f32 accumulator under
    `budget` (sublane padding of C_in/C_out included) and prefers >= 2 grid
    steps so the 'parallel' grid axis can shard across both TensorCores on
    v7x.  Never falls back to a single over-budget block: awkward H is padded
    and the padding sliced off in the wrapper."""
    sub_in = -(-c_in // 8) * 8
    sub_out = -(-c_out // 8) * 8
    # per H-row f32 bytes: x tile (2x buffered) + out tile (2x buffered) + acc
    bytes_per_h = 4 * nw * (2 * sub_in + 3 * sub_out)
    th = max(align, (budget // bytes_per_h) // align * align)
    hp = -(-h // align) * align
    if hp >= 2 * align:                       # force >= 2 grid steps when possible
        th = min(th, max(align, (hp // 2) // align * align))
    th = min(th, hp)
    hp = -(-hp // th) * th                    # pad so the grid divides exactly
    return th, hp


# ---------------------------------------------------------------------------
# Flat (lane-dense) path: used when N*W < 128.
# ---------------------------------------------------------------------------
def _conv1x1_flat_kernel(x_ref, wt_ref, b_ref, o_ref):
    """x_ref: (C_in, L); wt_ref: (C_out, C_in); b_ref: (C_out, 1);
    o_ref: (C_out, L) with L = th*N*W (lane-dense).
    Computes relu(W^T x + (b - 15)) with unrolled VPU FMAs (no MXU)."""
    c_out, L = o_ref.shape
    c_in = x_ref.shape[0]
    wt = wt_ref[...]                                           # (C_out, C_in), tiny
    acc = jnp.broadcast_to(b_ref[...], (c_out, L))             # one lane-bcast/tile
    for k in range(c_in):                                      # C_in == 3: unrolled
        xk = jnp.broadcast_to(x_ref[k][None, :], (c_out, L))   # sublane broadcast
        wk = jnp.broadcast_to(wt[:, k:k + 1], (c_out, L))      # lane broadcast
        acc = acc + xk * wk
    o_ref[...] = jnp.maximum(acc, 0.0).astype(o_ref.dtype)


def _conv1x1_flat(x_r, wt, b_col):
    """x_r: (C_in, H, NW); wt: (C_out, C_in); b_col: (C_out, 1)
    -> (C_out, H, NW) f32, relu'd (output lane dim inside the kernel is th*NW)."""
    c_in, h, nw = x_r.shape
    c_out = wt.shape[0]
    align = 128 // math.gcd(nw, 128)          # th multiple of this -> th*NW % 128 == 0
    th, hp = _pick_th(h, nw, c_in, c_out, align)
    if hp != h:
        x_r = jnp.pad(x_r, ((0, 0), (0, hp - h), (0, 0)))
    L = hp * nw
    lb = th * nw
    x_f = x_r.reshape(c_in, L)                # pure reshape (x_r is contiguous)
    out = pl.pallas_call(
        _conv1x1_flat_kernel,
        out_shape=jax.ShapeDtypeStruct((c_out, L), jnp.float32),
        grid_spec=pltpu.PrefetchScalarGridSpec(
            num_scalar_prefetch=0,
            grid=(L // lb,),
            in_specs=[
                pl.BlockSpec((c_in, lb), lambda i: (0, i)),
                pl.BlockSpec((c_out, c_in), lambda i: (0, 0)),
                pl.BlockSpec((c_out, 1), lambda i: (0, 0)),
            ],
            out_specs=pl.BlockSpec((c_out, lb), lambda i: (0, i)),
        ),
        compiler_params=pltpu.CompilerParams(
            dimension_semantics=("parallel",),
            vmem_limit_bytes=_VMEM_LIMIT_BYTES,
        ),
    )(x_f, wt, b_col)
    return out.reshape(c_out, hp, nw)[:, :h]


# ---------------------------------------------------------------------------
# Wide path: used when N*W >= 128 (lane dim already dense); the kernel writes
# (H, C_out, N*W), which is a pure reshape of the required (H, C_out, N, W).
# ---------------------------------------------------------------------------
def _conv1x1_wide_kernel(x_ref, wt_ref, b_ref, o_ref):
    """x_ref: (C_in, th, NW); wt_ref: (C_out, C_in); b_ref: (1, C_out, NW);
    o_ref: (th, C_out, NW)."""
    th, c_out, nw = o_ref.shape
    c_in = x_ref.shape[0]
    wt = wt_ref[...]
    acc = jnp.broadcast_to(b_ref[...], (th, c_out, nw))        # bias pre-broadcast
    for k in range(c_in):                                      # unrolled, no MXU
        xk = x_ref[k][:, None, :]                              # (th, 1, NW)
        wk = wt[:, k:k + 1][None]                              # (1, C_out, 1)
        acc = acc + xk * wk
    o_ref[...] = jnp.maximum(acc, 0.0).astype(o_ref.dtype)


def _conv1x1_wide(x_r, wt, b_nw):
    """x_r: (C_in, H, NW); wt: (C_out, C_in); b_nw: (1, C_out, NW)
    -> (H, C_out, NW) f32, relu'd."""
    c_in, h, nw = x_r.shape
    c_out = wt.shape[0]
    th, hp = _pick_th(h, nw, c_in, c_out, align=8)
    if hp != h:
        x_r = jnp.pad(x_r, ((0, 0), (0, hp - h), (0, 0)))
    out = pl.pallas_call(
        _conv1x1_wide_kernel,
        out_shape=jax.ShapeDtypeStruct((hp, c_out, nw), jnp.float32),
        grid_spec=pltpu.PrefetchScalarGridSpec(
            num_scalar_prefetch=0,
            grid=(hp // th,),
            in_specs=[
                pl.BlockSpec((c_in, th, nw), lambda i: (0, i, 0)),
                pl.BlockSpec((c_out, c_in), lambda i: (0, 0)),
                pl.BlockSpec((1, c_out, nw), lambda i: (0, 0, 0)),
            ],
            out_specs=pl.BlockSpec((th, c_out, nw), lambda i: (i, 0, 0)),
        ),
        compiler_params=pltpu.CompilerParams(
            dimension_semantics=("parallel",),
            vmem_limit_bytes=_VMEM_LIMIT_BYTES,
        ),
    )(x_r, wt, b_nw)
    return out[:h]


@jax.jit
def model_forward(x_nchw, w, b):
    """v7 = relu(transpose(relu(conv1x1(x) - 15), 0, 2)) -> (H, C_out, N, W).
    The -15 is folded into the bias; relu is applied exactly once in-kernel
    (the outer relu is a no-op since v3 >= 0); v4/v5 are dead code."""
    N, c_in, H, W = x_nchw.shape
    c_out = w.shape[1]
    nw = N * W
    # glue: NCHW -> (C_in, H, N*W); a pure reshape when N == 1 (the module's shape).
    x_r = jnp.transpose(x_nchw, (1, 2, 0, 3)).reshape(c_in, H, nw)
    wt = jnp.transpose(w)                                      # (C_out, C_in)
    b_fold = b - 15.0                                          # fold -15 into bias
    if nw >= 128:
        b_nw = jnp.broadcast_to(b_fold.reshape(1, c_out, 1), (1, c_out, nw))
        out = _conv1x1_wide(x_r, wt, b_nw)                     # (H, C_out, NW)
        return out.reshape(H, c_out, N, W)                     # pure reshape
    else:
        out = _conv1x1_flat(x_r, wt, b_fold.reshape(c_out, 1)) # (C_out, H, NW)
        out = out.reshape(c_out, H, N, W)
        return jnp.transpose(out, (1, 0, 2, 3))                # tiny C_out<->H swap


def reference_forward(x_nchw, w, b):
    """Pure-JAX reference of the module's math."""
    N, c_in, H, W = x_nchw.shape
    c_out = w.shape[1]
    x2d = jnp.transpose(x_nchw, (0, 2, 3, 1)).reshape(-1, c_in)
    v1 = jnp.einsum("mk,kc->mc", x2d, w,
                    precision=jax.lax.Precision.HIGHEST) + b
    v3 = jnp.maximum(v1 - 15.0, 0.0)
    v3 = jnp.transpose(v3.reshape(N, H, W, c_out), (0, 3, 1, 2))   # (N,C_out,H,W)
    return jnp.maximum(jnp.transpose(v3, (2, 1, 0, 3)), 0.0)       # (H,C_out,N,W)


if __name__ == "__main__":
    key = jax.random.PRNGKey(0)
    c_in, c_out = 3, 32
    configs = [
        (2, 16, 16),    # small test shape         (flat path, N*W = 32)
        (1, 64, 64),    # the module's own shape   (flat path, N*W = 64)
        (1, 16, 128),   # wide path                (N*W = 128, direct layout)
    ]
    for idx, (N, H, W) in enumerate(configs):
        k_x, k_w, k_b = jax.random.split(jax.random.fold_in(key, idx), 3)
        x = jax.random.normal(k_x, (N, c_in, H, W), dtype=jnp.float32)
        w = jax.random.normal(k_w, (c_in, c_out), dtype=jnp.float32)
        # bias centered near +15 so relu(conv(x) - 15) is exercised on both sides.
        b = jax.random.normal(k_b, (c_out,), dtype=jnp.float32) * 0.1 + 15.0

        out = jax.block_until_ready(model_forward(x, w, b))
        ref = reference_forward(x, w, b)

        assert out.shape == (H, c_out, N, W), (out.shape, (H, c_out, N, W))
        err = float(jnp.max(jnp.abs(out - ref)))
        assert jnp.allclose(out, ref, atol=1e-5, rtol=1e-5), err
    print("KERNEL_OK")
</pallas_src>

<mosaic_0001>
module attributes {stable_mosaic.version = 11 : i64} {
  func.func @_conv1x1_flat_kernel(%arg0: i32, %arg1: memref<3x256xf32, #tpu.memory_space<vmem>>, %arg2: memref<32x3xf32, #tpu.memory_space<vmem>>, %arg3: memref<32x1xf32, #tpu.memory_space<vmem>>, %arg4: memref<32x256xf32, #tpu.memory_space<vmem>>) attributes {dimension_semantics = [#tpu.dimension_semantics<parallel>], iteration_bounds = array<i64: 2>, scalar_prefetch = 0 : i64, scratch_operands = 0 : i64, tpu.core_type = #tpu.core_type<tc>, window_params = [{transform_indices = @transform_0, window_bounds = array<i64: 3, 256>}, {pipeline_mode = #tpu.pipeline_mode<synchronous>, transform_indices = @transform_1, window_bounds = array<i64: 32, 3>}, {pipeline_mode = #tpu.pipeline_mode<synchronous>, transform_indices = @transform_2, window_bounds = array<i64: 32, 1>}, {transform_indices = @transform_3, window_bounds = array<i64: 32, 256>}]} {
    %c0 = arith.constant 0 : index
    %c0_0 = arith.constant 0 : index
    %0 = vector.load %arg2[%c0, %c0_0] : memref<32x3xf32, #tpu.memory_space<vmem>>, vector<32x3xf32>
    %c0_1 = arith.constant 0 : index
    %c0_2 = arith.constant 0 : index
    %1 = vector.load %arg3[%c0_1, %c0_2] : memref<32x1xf32, #tpu.memory_space<vmem>>, vector<32x1xf32>
    %2 = vector.shape_cast %1 : vector<32x1xf32> to vector<32x1xf32>
    %3 = vector.broadcast %2 : vector<32x1xf32> to vector<32x256xf32>
    %c0_3 = arith.constant 0 : index
    %c0_4 = arith.constant 0 : index
    %4 = vector.load %arg1[%c0_3, %c0_4] : memref<3x256xf32, #tpu.memory_space<vmem>>, vector<1x256xf32>
    %5 = vector.shape_cast %4 : vector<1x256xf32> to vector<256xf32>
    %6 = vector.shape_cast %5 : vector<256xf32> to vector<1x256xf32>
    %7 = vector.shape_cast %6 : vector<1x256xf32> to vector<1x256xf32>
    %8 = vector.broadcast %7 : vector<1x256xf32> to vector<32x256xf32>
    %9 = vector.extract_strided_slice %0 {offsets = [0, 0], sizes = [32, 1], strides = [1, 1]} : vector<32x3xf32> to vector<32x1xf32>
    %10 = vector.shape_cast %9 : vector<32x1xf32> to vector<32x1xf32>
    %11 = vector.broadcast %10 : vector<32x1xf32> to vector<32x256xf32>
    %12 = arith.mulf %8, %11 : vector<32x256xf32>
    %13 = arith.addf %3, %12 : vector<32x256xf32>
    %c1 = arith.constant 1 : index
    %c0_5 = arith.constant 0 : index
    %14 = vector.load %arg1[%c1, %c0_5] : memref<3x256xf32, #tpu.memory_space<vmem>>, vector<1x256xf32>
    %15 = vector.shape_cast %14 : vector<1x256xf32> to vector<256xf32>
    %16 = vector.shape_cast %15 : vector<256xf32> to vector<1x256xf32>
    %17 = vector.shape_cast %16 : vector<1x256xf32> to vector<1x256xf32>
    %18 = vector.broadcast %17 : vector<1x256xf32> to vector<32x256xf32>
    %19 = vector.extract_strided_slice %0 {offsets = [0, 1], sizes = [32, 1], strides = [1, 1]} : vector<32x3xf32> to vector<32x1xf32>
    %20 = vector.shape_cast %19 : vector<32x1xf32> to vector<32x1xf32>
    %21 = vector.broadcast %20 : vector<32x1xf32> to vector<32x256xf32>
    %22 = arith.mulf %18, %21 : vector<32x256xf32>
    %23 = arith.addf %13, %22 : vector<32x256xf32>
    %c2 = arith.constant 2 : index
    %c0_6 = arith.constant 0 : index
    %24 = vector.load %arg1[%c2, %c0_6] : memref<3x256xf32, #tpu.memory_space<vmem>>, vector<1x256xf32>
    %25 = vector.shape_cast %24 : vector<1x256xf32> to vector<256xf32>
    %26 = vector.shape_cast %25 : vector<256xf32> to vector<1x256xf32>
    %27 = vector.shape_cast %26 : vector<1x256xf32> to vector<1x256xf32>
    %28 = vector.broadcast %27 : vector<1x256xf32> to vector<32x256xf32>
    %29 = vector.extract_strided_slice %0 {offsets = [0, 2], sizes = [32, 1], strides = [1, 1]} : vector<32x3xf32> to vector<32x1xf32>
    %30 = vector.shape_cast %29 : vector<32x1xf32> to vector<32x1xf32>
    %31 = vector.broadcast %30 : vector<32x1xf32> to vector<32x256xf32>
    %32 = arith.mulf %28, %31 : vector<32x256xf32>
    %33 = arith.addf %23, %32 : vector<32x256xf32>
    %cst = arith.constant 0.000000e+00 : f32
    %34 = vector.broadcast %cst : f32 to vector<32x256xf32>
    %35 = arith.maximumf %33, %34 : vector<32x256xf32>
    %c0_7 = arith.constant 0 : index
    %c0_8 = arith.constant 0 : index
    %36 = vector.load %arg4[%c0_7, %c0_8] : memref<32x256xf32, #tpu.memory_space<vmem>>, vector<32x256xf32>
    tpu.vector_store %arg4[%c0_7, %c0_8], %35 {strides = array<i32>} : memref<32x256xf32, #tpu.memory_space<vmem>>, vector<32x256xf32>,
    return
  }
  func.func @transform_0(%arg0: i32) -> (i32, i32) {
    %c0_i32 = arith.constant 0 : i32
    %c0_i32_0 = arith.constant 0 : i32
    return %c0_i32, %arg0 : i32, i32
  }
  func.func @transform_1(%arg0: i32) -> (i32, i32) {
    %c0_i32 = arith.constant 0 : i32
    %c0_i32_0 = arith.constant 0 : i32
    %c0_i32_1 = arith.constant 0 : i32
    return %c0_i32, %c0_i32_0 : i32, i32
  }
  func.func @transform_2(%arg0: i32) -> (i32, i32) {
    %c0_i32 = arith.constant 0 : i32
    %c0_i32_0 = arith.constant 0 : i32
    %c0_i32_1 = arith.constant 0 : i32
    return %c0_i32, %c0_i32_0 : i32, i32
  }
  func.func @transform_3(%arg0: i32) -> (i32, i32) {
    %c0_i32 = arith.constant 0 : i32
    %c0_i32_0 = arith.constant 0 : i32
    return %c0_i32, %arg0 : i32, i32
  }
}

</mosaic_0001>

<llo_original>
// kernel: model_forward.1
$region0: #{model_forward.1}
  #allocation0 [shape = 'u32[]', space=smem, size = 0x4, offset = 0x4, fixed_abs, tag = 'smem constant byte address 0x4 - core index']
  #allocation1 [shape = 'u32[144,128]{1,0:T(1,128)}', space=vmem, size = 0x12000, scoped, tag = 'internal scratch']
  %s0 = inlined_call_operand.vmem [shape: f32[3,512], index: 0, kind: input, shape index: {}]
  %s1 = inlined_call_operand.vmem [shape: f32[32,3], index: 1, kind: input, shape index: {}]
  %s2 = inlined_call_operand.vmem [shape: f32[32,1], index: 2, kind: input, shape index: {}]
  %s3 = inlined_call_operand.vmem [shape: f32[32,512], index: 3, kind: output, shape index: {}]
  %s4 = sld [smem:[#allocation0]]
  $region64: #{model_forward.1} parent=0
    _
  %s6 = ssub.s32 1, %s4
  %s7 = scalar_select 0, %s6, %s4
  $region1: #{model_forward.1} parent=0
    #allocation2 [shape = 'u8[65536]{0}', space=vmem, size = 0x10000, scoped, tag = 'output window, operand 0']
    loop: start=0, step=1, limit=4
    $region2: #{model_forward.1} parent=1 // loop_pre_header
      _
    $region3: #{model_forward.1} parent=1 // loop_header
      %s9 = sphi 0, %s13
      %p10 = scmp.ge.s32.totalorder %s9, 4
      %s19 = sphi 0, %s21
      %s22 = sphi 0, %s19
      %s23 = sphi 0, %s22
      %s39 = sphi 0, %s23
      %s43 = sphi 0, %s43
      %s45 = sphi 0, %s43
      %s46 = sphi 0, %s45
      %s60 = sphi 0, %s46
      %s64 = sphi 0, %s64
      %s66 = sphi 0, %s64
      %s67 = sphi 0, %s66
      %s81 = sphi 0, %s67
      %s87 = sphi 0, %s89
      %s90 = sphi 0, %s87
      %s91 = sphi 0, %s90
      %s107 = sphi 0, %s91
    $region4: #{model_forward.1} parent=1 // loop_header_branch
      %12 = sbr.rel (%p10) target = $region8
    $region5: #{model_forward.1} parent=1 // loop_body
      %s14 = ssub.s32 %s9, 1
      %s15 = ssub.s32 %s9, 2
      %s16 = sadd.s32 %s9, 1
      %s17 = ssub.s32 %s9, %s16
      %p18 = scmp.eq.s32.totalorder %s17, 0
      %s20 = sadd.s32 %s19, 1
      %s21 = scalar_select %p18, %s19, %s20
      %p24 = pneg %p18
      %p25 = scmp.eq.s32.totalorder %s9, 1
      %p26 = por %p24, %p25
      %p27 = scmp.ne.s32.totalorder %s19, %s22
      %p28 = scmp.eq.s32.totalorder %s9, 0
      %p29 = por %p27, %p28
      %p30 = scmp.ne.s32.totalorder %s19, %s22
      %p31 = scmp.eq.s32.totalorder %s14, 1
      %p32 = por %p30, %p31
      %p33 = scmp.ne.s32.totalorder %s22, %s23
      %p34 = scmp.eq.s32.totalorder %s14, 0
      %p35 = por %p33, %p34
      %p36 = scmp.ne.s32.totalorder %s22, %s23
      %p37 = scmp.eq.s32.totalorder %s15, 1
      %p38 = por %p36, %p37
      %p40 = scmp.ne.s32.totalorder %s23, %s39
      %p41 = scmp.eq.s32.totalorder %s15, 0
      %p42 = por %p40, %p41
      %s44 = sadd.s32 %s43, 1
      %p47 = scmp.eq.s32.totalorder %s9, 1
      %p48 = scmp.ne.s32.totalorder %s43, %s45
      %p49 = scmp.eq.s32.totalorder %s9, 0
      %p50 = por %p48, %p49
      %p51 = scmp.ne.s32.totalorder %s43, %s45
      %p52 = scmp.eq.s32.totalorder %s14, 1
      %p53 = por %p51, %p52
      %p54 = scmp.ne.s32.totalorder %s45, %s46
      %p55 = scmp.eq.s32.totalorder %s14, 0
      %p56 = por %p54, %p55
      %p57 = scmp.ne.s32.totalorder %s45, %s46
      %p58 = scmp.eq.s32.totalorder %s15, 1
      %p59 = por %p57, %p58
      %p61 = scmp.ne.s32.totalorder %s46, %s60
      %p62 = scmp.eq.s32.totalorder %s15, 0
      %p63 = por %p61, %p62
      %s65 = sadd.s32 %s64, 1
      %p68 = scmp.eq.s32.totalorder %s9, 1
      %p69 = scmp.ne.s32.totalorder %s64, %s66
      %p70 = scmp.eq.s32.totalorder %s9, 0
      %p71 = por %p69, %p70
      %p72 = scmp.ne.s32.totalorder %s64, %s66
      %p73 = scmp.eq.s32.totalorder %s14, 1
      %p74 = por %p72, %p73
      %p75 = scmp.ne.s32.totalorder %s66, %s67
      %p76 = scmp.eq.s32.totalorder %s14, 0
      %p77 = por %p75, %p76
      %p78 = scmp.ne.s32.totalorder %s66, %s67
      %p79 = scmp.eq.s32.totalorder %s15, 1
      %p80 = por %p78, %p79
      %p82 = scmp.ne.s32.totalorder %s67, %s81
      %p83 = scmp.eq.s32.totalorder %s15, 0
      %p84 = por %p82, %p83
      %s85 = ssub.s32 %s9, %s16
      %p86 = scmp.eq.s32.totalorder %s85, 0
      %s88 = sadd.s32 %s87, 1
      %s89 = scalar_select %p86, %s87, %s88
      %p92 = pneg %p86
      %p93 = scmp.eq.s32.totalorder %s9, 1
      %p94 = por %p92, %p93
      %p95 = scmp.ne.s32.totalorder %s87, %s90
      %p96 = scmp.eq.s32.totalorder %s9, 0
      %p97 = por %p95, %p96
      %p98 = scmp.ne.s32.totalorder %s87, %s90
      %p99 = scmp.eq.s32.totalorder %s14, 1
      %p100 = por %p98, %p99
      %p101 = scmp.ne.s32.totalorder %s90, %s91
      %p102 = scmp.eq.s32.totalorder %s14, 0
      %p103 = por %p101, %p102
      %p104 = scmp.ne.s32.totalorder %s90, %s91
      %p105 = scmp.eq.s32.totalorder %s15, 1
      %p106 = por %p104, %p105
      %p108 = scmp.ne.s32.totalorder %s91, %s107
      %p109 = scmp.eq.s32.totalorder %s15, 0
      %p110 = por %p108, %p109
      %p111 = scmp.le.s32.totalorder 1, %s9
      %p112 = scmp.lt.s32.totalorder %s9, 3
      %p113 = pnand %p111, %p112
      %p114 = pneg %p113
      // Predicated region
      $region9: #{model_forward.1} parent=5 // pred_check
        _
      $region10: #{model_forward.1} parent=5 // pred_check_branch
        %116 = sbr.rel (%p113) target = $region12
      $region11: #{model_forward.1} parent=5 // pred_region
        %s117 = ssub.s32 %s9, 1
        // Predicated region
        $region13: #{model_forward.1} parent=11 // pred_check
          %p118 = pneg %p56
        $region14: #{model_forward.1} parent=11 // pred_check_branch
          %120 = sbr.rel (%p118) target = $region16
        $region15: #{model_forward.1} parent=11 // pred_region
          _
        $region16: #{model_forward.1} parent=11 // pred_fallthru
          _
        // Predicated region
        $region17: #{model_forward.1} parent=11 // pred_check
          %p121 = pneg %p77
        $region18: #{model_forward.1} parent=11 // pred_check_branch
          %123 = sbr.rel (%p121) target = $region20
        $region19: #{model_forward.1} parent=11 // pred_region
          _
        $region20: #{model_forward.1} parent=11 // pred_fallthru
          _
      $region12: #{model_forward.1} parent=5 // pred_fallthru
        _
      %p124 = scmp.lt.s32.totalorder %s9, 2
      // Predicated region
      $region21: #{model_forward.1} parent=5 // pred_check
        %p125 = pneg %p124
      $region22: #{model_forward.1} parent=5 // pred_check_branch
        %127 = sbr.rel (%p125) target = $region24
      $region23: #{model_forward.1} parent=5 // pred_region
        // Predicated region
        $region25: #{model_forward.1} parent=23 // pred_check
          %p128 = pneg %p29
        $region26: #{model_forward.1} parent=23 // pred_check_branch
          %130 = sbr.rel (%p128) target = $region28
        $region27: #{model_forward.1} parent=23 // pred_region
          %s131 = smul.u32 2, %s9
          %p132 = scmp.lt.s32.totalorder %s131, 3
          %s133 = scalar_select %p132, %s131, 3
          %s134 = smul.addr %s133, 4
          %s135 = scalar_lea.vmem %s0, %s134
          %s136 = smul.u32 2, %s9
        $region28: #{model_forward.1} parent=23 // pred_fallthru
          _
      $region24: #{model_forward.1} parent=5 // pred_fallthru
        _
      %p137 = scmp.le.s32.totalorder 1, %s9
      %p138 = scmp.lt.s32.totalorder %s9, 3
      %p139 = pnand %p137, %p138
      %p140 = pneg %p139
      // Predicated region
      $region29: #{model_forward.1} parent=5 // pred_check
        _
      $region30: #{model_forward.1} parent=5 // pred_check_branch
        %142 = sbr.rel (%p139) target = $region32
      $region31: #{model_forward.1} parent=5 // pred_region
        %s143 = ssub.s32 %s9, 1
        %s144 = smul.u32 2, %s14
        %p145 = scmp.lt.s32.totalorder %s144, 3
        %s146 = scalar_select %p145, %s144, 3
        %s147 = smul.addr %s146, 4
        %s148 = scalar_lea.vmem %s0, %s147
        %p149 = pneg %p35
        %p150 = pneg %p32
        %p151 = pneg %p56
        %p152 = pneg %p53
        %p153 = pneg %p77
        %p154 = pneg %p74
        %p155 = pneg %p103
        %p156 = pneg %p100
        %s157 = sand.u32 %s90, 1
        %s158 = sand.u32 %s90, 1
        %s159 = smul.addr %s158, 64
        %s160 = scalar_lea.vmem [#allocation2], %s159
        %s161 = smul.u32 2, %s14
        %p162 = scmp.lt.s32.totalorder %s161, 3
        %s163 = scalar_select %p162, %s161, 3
        %s164 = smul.addr %s163, 4
        %s165 = scalar_lea.vmem %s0, %s164
        %s166 = smul.u32 2, %s14
        %s167 = smul.u32 2, %s14
        %v168 = vld [vmem:[%s1] sm:$0xff]
        %v169 = vld [vmem:[%s1 + $0x8] sm:$0xff]
        %v170 = vld [vmem:[%s1 + $0x10] sm:$0xff]
        %v171 = vld [vmem:[%s1 + $0x18] sm:$0xff]
        %v172 = vld [vmem:[%s2] sm:$0xff]
        %v173 = vld [vmem:[%s2 + $0x8] sm:$0xff]
        %v174 = vld [vmem:[%s2 + $0x10] sm:$0xff]
        %v175 = vld [vmem:[%s2 + $0x18] sm:$0xff]
        %177 = vset.pattern.permute.xlu0 0
        %178 = vperm.xlu0 %177, %v172
        %v179 = vpop.permute.xlu0 %178
        %182 = vset.pattern.permute.xlu0 0
        %183 = vperm.xlu0 %182, %v173
        %v184 = vpop.permute.xlu0 %183
        %187 = vset.pattern.permute.xlu0 0
        %188 = vperm.xlu0 %187, %v174
        %v189 = vpop.permute.xlu0 %188
        %192 = vset.pattern.permute.xlu0 0
        %193 = vperm.xlu0 %192, %v175
        %v194 = vpop.permute.xlu0 %193
        %v196 = vld [vmem:[%s165] ss:$4 sm:$0x3]
        %v198 = vlaneseq
        %v199 = vshrl.u32 %v198, 7
        %v200 = vsub.s32 0, %v199
        %v201 = vrot.slane %v196, %v200
        %v202 = vlaneseq
        %v203 = vshrl.u32 %v202, 7
        %v204 = vsub.s32 1, %v203
        %v205 = vrot.slane %v196, %v204
        %209 = vset.pattern.permute.xlu0 0
        %210 = vperm.xlu0 %209, %v168
        %v211 = vpop.permute.xlu0 %210
        %214 = vset.pattern.permute.xlu0 0
        %215 = vperm.xlu0 %214, %v169
        %v216 = vpop.permute.xlu0 %215
        %219 = vset.pattern.permute.xlu0 0
        %220 = vperm.xlu0 %219, %v170
        %v221 = vpop.permute.xlu0 %220
        %224 = vset.pattern.permute.xlu0 0
        %225 = vperm.xlu0 %224, %v171
        %v226 = vpop.permute.xlu0 %225
        %v228 = vmul.f32 %v201, %v211
        %v229 = vmul.f32 %v205, %v211
        %v230 = vmul.f32 %v201, %v216
        %v231 = vmul.f32 %v205, %v216
        %v232 = vmul.f32 %v201, %v221
        %v233 = vmul.f32 %v205, %v221
        %v234 = vmul.f32 %v201, %v226
        %v235 = vmul.f32 %v205, %v226
        %v236 = vadd.f32 %v179, %v228
        %v237 = vadd.f32 %v179, %v229
        %v238 = vadd.f32 %v184, %v230
        %v239 = vadd.f32 %v184, %v231
        %v240 = vadd.f32 %v189, %v232
        %v241 = vadd.f32 %v189, %v233
        %v242 = vadd.f32 %v194, %v234
        %v243 = vadd.f32 %v194, %v235
        %s244 = scalar_lea.vmem %s165, 1
        %v245 = vld [vmem:[%s244] ss:$4 sm:$0x3]
        %v247 = vlaneseq
        %v248 = vshrl.u32 %v247, 7
        %v249 = vsub.s32 0, %v248
        %v250 = vrot.slane %v245, %v249
        %v251 = vlaneseq
        %v252 = vshrl.u32 %v251, 7
        %v253 = vsub.s32 1, %v252
        %v254 = vrot.slane %v245, %v253
        %257 = vset.pattern.permute.xlu0 1
        %258 = vperm.xlu0 %257, %v168
        %v259 = vpop.permute.xlu0 %258
        %261 = vset.pattern.permute.xlu0 1
        %262 = vperm.xlu0 %261, %v169
        %v263 = vpop.permute.xlu0 %262
        %265 = vset.pattern.permute.xlu0 1
        %266 = vperm.xlu0 %265, %v170
        %v267 = vpop.permute.xlu0 %266
        %269 = vset.pattern.permute.xlu0 1
        %270 = vperm.xlu0 %269, %v171
        %v271 = vpop.permute.xlu0 %270
        %v273 = vmul.f32 %v250, %v259
        %v274 = vmul.f32 %v254, %v259
        %v275 = vmul.f32 %v250, %v263
        %v276 = vmul.f32 %v254, %v263
        %v277 = vmul.f32 %v250, %v267
        %v278 = vmul.f32 %v254, %v267
        %v279 = vmul.f32 %v250, %v271
        %v280 = vmul.f32 %v254, %v271
        %v281 = vadd.f32 %v236, %v273
        %v282 = vadd.f32 %v237, %v274
        %v283 = vadd.f32 %v238, %v275
        %v284 = vadd.f32 %v239, %v276
        %v285 = vadd.f32 %v240, %v277
        %v286 = vadd.f32 %v241, %v278
        %v287 = vadd.f32 %v242, %v279
        %v288 = vadd.f32 %v243, %v280
        %s289 = scalar_lea.vmem %s165, 2
        %v290 = vld [vmem:[%s289] ss:$4 sm:$0x3]
        %v292 = vlaneseq
        %v293 = vshrl.u32 %v292, 7
        %v294 = vsub.s32 0, %v293
        %v295 = vrot.slane %v290, %v294
        %v296 = vlaneseq
        %v297 = vshrl.u32 %v296, 7
        %v298 = vsub.s32 1, %v297
        %v299 = vrot.slane %v290, %v298
        %302 = vset.pattern.permute.xlu0 2
        %303 = vperm.xlu0 %302, %v168
        %v304 = vpop.permute.xlu0 %303
        %306 = vset.pattern.permute.xlu0 2
        %307 = vperm.xlu0 %306, %v169
        %v308 = vpop.permute.xlu0 %307
        %310 = vset.pattern.permute.xlu0 2
        %311 = vperm.xlu0 %310, %v170
        %v312 = vpop.permute.xlu0 %311
        %314 = vset.pattern.permute.xlu0 2
        %315 = vperm.xlu0 %314, %v171
        %v316 = vpop.permute.xlu0 %315
        %v318 = vmul.f32 %v295, %v304
        %v319 = vmul.f32 %v299, %v304
        %v320 = vmul.f32 %v295, %v308
        %v321 = vmul.f32 %v299, %v308
        %v322 = vmul.f32 %v295, %v312
        %v323 = vmul.f32 %v299, %v312
        %v324 = vmul.f32 %v295, %v316
        %v325 = vmul.f32 %v299, %v316
        %v326 = vadd.f32 %v281, %v318
        %v327 = vadd.f32 %v282, %v319
        %v328 = vadd.f32 %v283, %v320
        %v329 = vadd.f32 %v284, %v321
        %v330 = vadd.f32 %v285, %v322
        %v331 = vadd.f32 %v286, %v323
        %v332 = vadd.f32 %v287, %v324
        %v333 = vadd.f32 %v288, %v325
        %v334 = vmax.f32 %v326, 0.0
        %v335 = vmax.f32 %v327, 0.0
        %v336 = vmax.f32 %v328, 0.0
        %v337 = vmax.f32 %v329, 0.0
        %v338 = vmax.f32 %v330, 0.0
        %v339 = vmax.f32 %v331, 0.0
        %v340 = vmax.f32 %v332, 0.0
        %v341 = vmax.f32 %v333, 0.0
        %342 = vst [vmem:[%s160] sm:$0xff] %v334
        %343 = vst [vmem:[%s160 + $0x8] sm:$0xff] %v335
        %344 = vst [vmem:[%s160 + $0x10] sm:$0xff] %v336
        %345 = vst [vmem:[%s160 + $0x18] sm:$0xff] %v337
        %346 = vst [vmem:[%s160 + $0x20] sm:$0xff] %v338
        %347 = vst [vmem:[%s160 + $0x28] sm:$0xff] %v339
        %348 = vst [vmem:[%s160 + $0x30] sm:$0xff] %v340
        %349 = vst [vmem:[%s160 + $0x38] sm:$0xff] %v341
        %s350 = sand.u32 %s90, 1
        %s351 = sand.u32 %s90, 1
        %s352 = smul.addr %s351, 64
        %s353 = scalar_lea.vmem [#allocation2], %s352
        // Predicated region
        $region33: #{model_forward.1} parent=31 // pred_check
          %p354 = pneg %p100
        $region34: #{model_forward.1} parent=31 // pred_check_branch
          %356 = sbr.rel (%p354) target = $region36
        $region35: #{model_forward.1} parent=31 // pred_region
          %s357 = smul.u32 2, %s14
          %s358 = smul.addr %s357, 8
          %s359 = scalar_lea.vmem %s3, %s358
          // Predicated region
          $region37: #{model_forward.1} parent=35 // pred_check
            _
          $region38: #{model_forward.1} parent=35 // pred_check_branch
            %361 = sbr.rel (0) target = $region40
          $region39: #{model_forward.1} parent=35 // pred_region
            // Predicated region
            $region41: #{model_forward.1} parent=39 // pred_check
              _
            $region42: #{model_forward.1} parent=39 // pred_check_branch
              %363 = sbr.rel (0) target = $region44
            $region43: #{model_forward.1} parent=39 // pred_region
              loop: start=0, step=1, limit=1
              $region45: #{model_forward.1} parent=43 // loop_pre_header
                _
              $region46: #{model_forward.1} parent=43 // loop_header
                %s365 = sphi 0, %s369
                %p366 = scmp.ge.s32.totalorder %s365, 1
                %s370 = sphi %s353, %s353
                %s371 = sphi %s359, %s359
              $region47: #{model_forward.1} parent=43 // loop_header_branch
                %368 = sbr.rel (%p366) target = $region51
              $region48: #{model_forward.1} parent=43 // loop_body
                %v372 = vld [vmem:[%s370] sm:$0xff]
                %373 = vst [vmem:[%s371] sm:$0xff] %v372
                %v374 = vld [vmem:[%s370 + $0x8] sm:$0xff]
                %375 = vst [vmem:[%s371 + $0x8] sm:$0xff] %v374
                %v376 = vld [vmem:[%s370 + $0x10] sm:$0xff]
                %377 = vst [vmem:[%s371 + $0x20] sm:$0xff] %v376
                %v378 = vld [vmem:[%s370 + $0x18] sm:$0xff]
                %379 = vst [vmem:[%s371 + $0x28] sm:$0xff] %v378
                %v380 = vld [vmem:[%s370 + $0x20] sm:$0xff]
                %381 = vst [vmem:[%s371 + $0x40] sm:$0xff] %v380
                %v382 = vld [vmem:[%s370 + $0x28] sm:$0xff]
                %383 = vst [vmem:[%s371 + $0x48] sm:$0xff] %v382
                %v384 = vld [vmem:[%s370 + $0x30] sm:$0xff]
                %385 = vst [vmem:[%s371 + $0x60] sm:$0xff] %v384
                %v386 = vld [vmem:[%s370 + $0x38] sm:$0xff]
                %387 = vst [vmem:[%s371 + $0x68] sm:$0xff] %v386
              $region49: #{model_forward.1} parent=43 // loop_footer
                %s369 = sadd.s32 1, %s365
              $region50: #{model_forward.1} parent=43 // loop_footer_branch
                %364 = sbr.rel target = $region46
              $region51: #{model_forward.1} parent=43 // loop_exit
                _
            $region44: #{model_forward.1} parent=39 // pred_fallthru
              _
            // Predicated region
            $region52: #{model_forward.1} parent=39 // pred_check
              _
            $region53: #{model_forward.1} parent=39 // pred_check_branch
              %389 = sbr.rel target = $region55
            $region54: #{model_forward.1} parent=39 // pred_region
              _
            $region55: #{model_forward.1} parent=39 // pred_fallthru
              _
          $region40: #{model_forward.1} parent=35 // pred_fallthru
            _
          %390 = vnop
        $region36: #{model_forward.1} parent=31 // pred_fallthru
          _
      $region32: #{model_forward.1} parent=5 // pred_fallthru
        _
      %p391 = scmp.le.s32.totalorder 2, %s9
      // Predicated region
      $region56: #{model_forward.1} parent=5 // pred_check
        %p392 = pneg %p391
      $region57: #{model_forward.1} parent=5 // pred_check_branch
        %394 = sbr.rel (%p392) target = $region59
      $region58: #{model_forward.1} parent=5 // pred_region
        %s395 = ssub.s32 %s9, 2
        // Predicated region
        $region60: #{model_forward.1} parent=58 // pred_check
          %p396 = pneg %p106
        $region61: #{model_forward.1} parent=58 // pred_check_branch
          %398 = sbr.rel (%p396) target = $region63
        $region62: #{model_forward.1} parent=58 // pred_region
          %s399 = sand.u32 %s91, 1
          %s400 = sand.u32 %s91, 1
          %s401 = smul.addr %s400, 64
          %s402 = scalar_lea.vmem [#allocation2], %s401
        $region63: #{model_forward.1} parent=58 // pred_fallthru
          _
      $region59: #{model_forward.1} parent=5 // pred_fallthru
        _
    $region6: #{model_forward.1} parent=1 // loop_footer
      %s13 = sadd.s32 1, %s9
    $region7: #{model_forward.1} parent=1 // loop_footer_branch
      %8 = sbr.rel target = $region3
    $region8: #{model_forward.1} parent=1 // loop_exit
      _

</llo_original>
